<compile_context>
chip_gen: v5e
topology: v5e:2x2
jax: 0.10.0
libtpu: 0.0.40
codegen_flags: <defaults>
</compile_context>

<pallas_src>
import jax
import jax.numpy as jnp
from jax import lax
from jax.experimental import pallas as pl
from jax.experimental.pallas import tpu as pltpu

# ----------------------------------------------------------------------------
# Network description (Brain0): 583 -> 100 -> 100 -> 30 -> 25 -> 5 -> 5 -> 5
SIZES = [583, 100, 100, 30, 25, 5, 5, 5]
OUT_DIM = SIZES[-1]                 # 5
N_LAYERS = len(SIZES) - 1           # 7
LANE = 128
_ACTS = ("lrelu", "sig", "sig", "sig", "lrelu", "lrelu", "lrelu")
W_REST_ROWS = (N_LAYERS - 1) * LANE  # 768


def _round_up(n, m):
    return ((n + m - 1) // m) * m


def _leaky_relu(v):
    # torch.nn.LeakyReLU default negative_slope = 0.01
    return jnp.where(v >= 0, v, 0.01 * v)


def _sigmoid_kernel(v):
    # tanh form: one EUP op on the critical path instead of exp->add->recip.
    return 0.5 * jnp.tanh(0.5 * v) + 0.5


def _sigmoid_ref(v):
    return 1.0 / (1.0 + jnp.exp(-v))


# ----------------------------------------------------------------------------
# Kernel: whole 7-layer MLP + masked softmax on one (TILE_B, 583) batch tile.
def brain0_kernel(x_ref, w0_ref, wr_ref, b_ref, o_ref):
    h = x_ref[...]                                        # (TILE_B, 583) f32

    # Layer 0: K = 583 (unpadded), N padded to 128 lanes (zero cols).
    z = jnp.dot(h, w0_ref[...], preferred_element_type=jnp.float32) + b_ref[0:1, :]
    h = _leaky_relu(z)                                    # (TILE_B, 128)

    # Layers 1..6: 128-aligned K and N, static aligned slices of packed slab.
    off = 0
    for i in range(1, N_LAYERS):
        w = wr_ref[off:off + LANE, :]                     # (128, 128)
        z = jnp.dot(h, w, preferred_element_type=jnp.float32) + b_ref[i:i + 1, :]
        h = _sigmoid_kernel(z) if _ACTS[i] == "sig" else _leaky_relu(z)
        off += LANE

    # Softmax over the first OUT_DIM lanes only; padded lanes -> -inf -> 0.
    lane_id = lax.broadcasted_iota(jnp.int32, h.shape, 1)
    h = jnp.where(lane_id < OUT_DIM, h, -jnp.inf)
    m = jnp.max(h, axis=-1, keepdims=True)
    e = jnp.exp(h - m)
    denom = jnp.sum(e, axis=-1, keepdims=True)
    o_ref[...] = e * pl.reciprocal(denom, approx=False)


# ----------------------------------------------------------------------------
# Host-side packing / wrapper.
def pack_params(params):
    """Pack [(W_t, b)] (W_t is (in_dim, out_dim)) into:
         w0: (583, 128)   layer-0 weights, zero-padded columns
         wr: (768, 128)   layers 1..6, each occupying 128 zero-padded rows
         bp: (8, 128)     one bias row per layer, zero-padded
    Zero padding keeps the padded network exactly equal to the original:
    padded output lanes feed zero weight ROWS in the next layer.
    """
    w0_t, b0 = params[0]
    w0 = jnp.zeros((SIZES[0], LANE), jnp.float32).at[:, :SIZES[1]].set(w0_t)
    wr = jnp.zeros((W_REST_ROWS, LANE), jnp.float32)
    bp = jnp.zeros((8, LANE), jnp.float32).at[0, :SIZES[1]].set(jnp.reshape(b0, (-1,)))
    off = 0
    for i in range(1, N_LAYERS):
        w_t, b = params[i]
        k, n = w_t.shape
        wr = wr.at[off:off + k, :n].set(w_t)
        bp = bp.at[i, :n].set(jnp.reshape(b, (-1,)))
        off += LANE
    return w0, wr, bp


def _pick_tile_b(B, max_tile_b=1024):
    """>= 2 (even) grid steps whenever B > 8, <= max_tile_b rows per step."""
    if B <= 8:
        return 8
    n_tiles = max(2, pl.cdiv(B, max_tile_b))
    if n_tiles % 2:
        n_tiles += 1                      # even step count for v7x's 2 TCs
    return _round_up(pl.cdiv(B, n_tiles), 8)


def brain0_forward(x, w0, wr, bp):
    """x: (B, 583) f32.  Returns softmax probabilities of shape (B, 5)."""
    B, D = x.shape
    tile_b = _pick_tile_b(B)
    grid = (pl.cdiv(B, tile_b),)          # ragged last block handled by Pallas

    out = pl.pallas_call(
        brain0_kernel,
        out_shape=jax.ShapeDtypeStruct((B, LANE), jnp.float32),
        grid_spec=pltpu.PrefetchScalarGridSpec(
            num_scalar_prefetch=0,
            grid=grid,
            in_specs=[
                pl.BlockSpec((tile_b, D), lambda i: (i, 0)),          # x tile
                pl.BlockSpec((SIZES[0], LANE), lambda i: (0, 0)),     # w0, resident
                pl.BlockSpec((W_REST_ROWS, LANE), lambda i: (0, 0)),  # w1..6, resident
                pl.BlockSpec((8, LANE), lambda i: (0, 0)),            # biases, resident
            ],
            out_specs=pl.BlockSpec((tile_b, LANE), lambda i: (i, 0)),
        ),
        compiler_params=pltpu.CompilerParams(
            dimension_semantics=("parallel",),   # shard batch across TCs on v7x
        ),
    )(x, w0, wr, bp)
    return out[:, :OUT_DIM]


# ----------------------------------------------------------------------------
# Deterministic init mimicking torch.nn.Linear (uniform +-1/sqrt(fan_in)).
def init_params(key):
    params = []
    for i in range(N_LAYERS):
        fan_in, fan_out = SIZES[i], SIZES[i + 1]
        key, kw, kb = jax.random.split(key, 3)
        bound = 1.0 / jnp.sqrt(jnp.float32(fan_in))
        w = jax.random.uniform(kw, (fan_out, fan_in), jnp.float32, -bound, bound)
        b = jax.random.uniform(kb, (fan_out,), jnp.float32, -bound, bound)
        params.append((w.T, b))                       # pre-transposed to (in, out)
    return params


def reference_forward(x, params):
    """Plain-JAX reference for sanity checking (exact module semantics)."""
    h = x
    acts = [_leaky_relu, _sigmoid_ref, _sigmoid_ref, _sigmoid_ref,
            _leaky_relu, _leaky_relu, _leaky_relu]
    for (w_t, b), act in zip(params, acts):
        h = act(h @ w_t + b)
    return jax.nn.softmax(h, axis=-1)


if __name__ == "__main__":
    key = jax.random.PRNGKey(0)
    key, kx1, kx2 = jax.random.split(key, 3)
    params = init_params(key)
    w0, wr, bp = pack_params(params)

    # Small primary case (single grid step).
    B1 = 2
    x1 = jax.random.normal(kx1, (B1, SIZES[0]), jnp.float32)
    y1 = jax.block_until_ready(brain0_forward(x1, w0, wr, bp))
    y1_ref = reference_forward(x1, params)
    assert y1.shape == (B1, OUT_DIM)
    assert jnp.allclose(y1, y1_ref, atol=1e-5, rtol=1e-5)
    assert jnp.allclose(jnp.sum(y1, axis=-1), 1.0, atol=1e-5)

    # Secondary case exercising 2 grid steps + ragged last block.
    B2 = 33
    x2 = jax.random.normal(kx2, (B2, SIZES[0]), jnp.float32)
    y2 = jax.block_until_ready(brain0_forward(x2, w0, wr, bp))
    y2_ref = reference_forward(x2, params)
    assert y2.shape == (B2, OUT_DIM)
    assert jnp.allclose(y2, y2_ref, atol=1e-5, rtol=1e-5)
    assert jnp.allclose(jnp.sum(y2, axis=-1), 1.0, atol=1e-5)

    print("KERNEL_OK")
</pallas_src>

<mosaic_0001>
module attributes {stable_mosaic.version = 11 : i64} {
  func.func @brain0_kernel(%arg0: i32, %arg1: memref<8x583xf32, #tpu.memory_space<vmem>>, %arg2: memref<583x128xf32, #tpu.memory_space<vmem>>, %arg3: memref<768x128xf32, #tpu.memory_space<vmem>>, %arg4: memref<8x128xf32, #tpu.memory_space<vmem>>, %arg5: memref<8x128xf32, #tpu.memory_space<vmem>>) attributes {dimension_semantics = [#tpu.dimension_semantics<parallel>], iteration_bounds = array<i64: 1>, scalar_prefetch = 0 : i64, scratch_operands = 0 : i64, tpu.core_type = #tpu.core_type<tc>, window_params = [{transform_indices = @transform_0, window_bounds = array<i64: 8, 583>}, {pipeline_mode = #tpu.pipeline_mode<synchronous>, transform_indices = @transform_1, window_bounds = array<i64: 583, 128>}, {pipeline_mode = #tpu.pipeline_mode<synchronous>, transform_indices = @transform_2, window_bounds = array<i64: 768, 128>}, {pipeline_mode = #tpu.pipeline_mode<synchronous>, transform_indices = @transform_3, window_bounds = array<i64: 8, 128>}, {transform_indices = @transform_4, window_bounds = array<i64: 8, 128>}]} {
    %c0 = arith.constant 0 : index
    %c0_0 = arith.constant 0 : index
    %0 = vector.load %arg1[%c0, %c0_0] : memref<8x583xf32, #tpu.memory_space<vmem>>, vector<8x583xf32>
    %c0_1 = arith.constant 0 : index
    %c0_2 = arith.constant 0 : index
    %1 = vector.load %arg2[%c0_1, %c0_2] : memref<583x128xf32, #tpu.memory_space<vmem>>, vector<583x128xf32>
    %cst = arith.constant dense<0.000000e+00> : vector<8x128xf32>
    %2 = tpu.matmul %0, %1, %cst {dimension_numbers = #tpu.dot_dimension_numbers<[1], [0], [0], [1], [0, 0, 1, 1], [], []>} : vector<8x583xf32>, vector<583x128xf32>, vector<8x128xf32> -> vector<8x128xf32>
    %c0_3 = arith.constant 0 : index
    %c0_4 = arith.constant 0 : index
    %3 = vector.load %arg4[%c0_3, %c0_4] : memref<8x128xf32, #tpu.memory_space<vmem>>, vector<1x128xf32>
    %4 = vector.broadcast %3 : vector<1x128xf32> to vector<8x128xf32>
    %5 = arith.addf %2, %4 : vector<8x128xf32>
    %cst_5 = arith.constant 0.000000e+00 : f32
    %6 = vector.broadcast %cst_5 : f32 to vector<8x128xf32>
    %7 = arith.cmpf oge, %5, %6 : vector<8x128xf32>
    %cst_6 = arith.constant 0.00999999977 : f32
    %8 = vector.broadcast %cst_6 : f32 to vector<8x128xf32>
    %9 = arith.mulf %8, %5 : vector<8x128xf32>
    %10 = arith.select %7, %5, %9 : vector<8x128xi1>, vector<8x128xf32>
    %c0_7 = arith.constant 0 : index
    %c0_8 = arith.constant 0 : index
    %11 = vector.load %arg3[%c0_7, %c0_8] : memref<768x128xf32, #tpu.memory_space<vmem>>, vector<128x128xf32>
    %cst_9 = arith.constant dense<0.000000e+00> : vector<8x128xf32>
    %12 = tpu.matmul %10, %11, %cst_9 {dimension_numbers = #tpu.dot_dimension_numbers<[1], [0], [0], [1], [0, 0, 1, 1], [], []>} : vector<8x128xf32>, vector<128x128xf32>, vector<8x128xf32> -> vector<8x128xf32>
    %c1 = arith.constant 1 : index
    %c0_10 = arith.constant 0 : index
    %13 = vector.load %arg4[%c1, %c0_10] : memref<8x128xf32, #tpu.memory_space<vmem>>, vector<1x128xf32>
    %14 = vector.broadcast %13 : vector<1x128xf32> to vector<8x128xf32>
    %15 = arith.addf %12, %14 : vector<8x128xf32>
    %cst_11 = arith.constant 5.000000e-01 : f32
    %16 = vector.broadcast %cst_11 : f32 to vector<8x128xf32>
    %17 = arith.mulf %16, %15 : vector<8x128xf32>
    %18 = math.tanh %17 : vector<8x128xf32>
    %cst_12 = arith.constant 5.000000e-01 : f32
    %19 = vector.broadcast %cst_12 : f32 to vector<8x128xf32>
    %20 = arith.mulf %19, %18 : vector<8x128xf32>
    %cst_13 = arith.constant 5.000000e-01 : f32
    %21 = vector.broadcast %cst_13 : f32 to vector<8x128xf32>
    %22 = arith.addf %20, %21 : vector<8x128xf32>
    %c128 = arith.constant 128 : index
    %c0_14 = arith.constant 0 : index
    %23 = vector.load %arg3[%c128, %c0_14] : memref<768x128xf32, #tpu.memory_space<vmem>>, vector<128x128xf32>
    %cst_15 = arith.constant dense<0.000000e+00> : vector<8x128xf32>
    %24 = tpu.matmul %22, %23, %cst_15 {dimension_numbers = #tpu.dot_dimension_numbers<[1], [0], [0], [1], [0, 0, 1, 1], [], []>} : vector<8x128xf32>, vector<128x128xf32>, vector<8x128xf32> -> vector<8x128xf32>
    %c2 = arith.constant 2 : index
    %c0_16 = arith.constant 0 : index
    %25 = vector.load %arg4[%c2, %c0_16] : memref<8x128xf32, #tpu.memory_space<vmem>>, vector<1x128xf32>
    %26 = vector.broadcast %25 : vector<1x128xf32> to vector<8x128xf32>
    %27 = arith.addf %24, %26 : vector<8x128xf32>
    %cst_17 = arith.constant 5.000000e-01 : f32
    %28 = vector.broadcast %cst_17 : f32 to vector<8x128xf32>
    %29 = arith.mulf %28, %27 : vector<8x128xf32>
    %30 = math.tanh %29 : vector<8x128xf32>
    %cst_18 = arith.constant 5.000000e-01 : f32
    %31 = vector.broadcast %cst_18 : f32 to vector<8x128xf32>
    %32 = arith.mulf %31, %30 : vector<8x128xf32>
    %cst_19 = arith.constant 5.000000e-01 : f32
    %33 = vector.broadcast %cst_19 : f32 to vector<8x128xf32>
    %34 = arith.addf %32, %33 : vector<8x128xf32>
    %c256 = arith.constant 256 : index
    %c0_20 = arith.constant 0 : index
    %35 = vector.load %arg3[%c256, %c0_20] : memref<768x128xf32, #tpu.memory_space<vmem>>, vector<128x128xf32>
    %cst_21 = arith.constant dense<0.000000e+00> : vector<8x128xf32>
    %36 = tpu.matmul %34, %35, %cst_21 {dimension_numbers = #tpu.dot_dimension_numbers<[1], [0], [0], [1], [0, 0, 1, 1], [], []>} : vector<8x128xf32>, vector<128x128xf32>, vector<8x128xf32> -> vector<8x128xf32>
    %c3 = arith.constant 3 : index
    %c0_22 = arith.constant 0 : index
    %37 = vector.load %arg4[%c3, %c0_22] : memref<8x128xf32, #tpu.memory_space<vmem>>, vector<1x128xf32>
    %38 = vector.broadcast %37 : vector<1x128xf32> to vector<8x128xf32>
    %39 = arith.addf %36, %38 : vector<8x128xf32>
    %cst_23 = arith.constant 5.000000e-01 : f32
    %40 = vector.broadcast %cst_23 : f32 to vector<8x128xf32>
    %41 = arith.mulf %40, %39 : vector<8x128xf32>
    %42 = math.tanh %41 : vector<8x128xf32>
    %cst_24 = arith.constant 5.000000e-01 : f32
    %43 = vector.broadcast %cst_24 : f32 to vector<8x128xf32>
    %44 = arith.mulf %43, %42 : vector<8x128xf32>
    %cst_25 = arith.constant 5.000000e-01 : f32
    %45 = vector.broadcast %cst_25 : f32 to vector<8x128xf32>
    %46 = arith.addf %44, %45 : vector<8x128xf32>
    %c384 = arith.constant 384 : index
    %c0_26 = arith.constant 0 : index
    %47 = vector.load %arg3[%c384, %c0_26] : memref<768x128xf32, #tpu.memory_space<vmem>>, vector<128x128xf32>
    %cst_27 = arith.constant dense<0.000000e+00> : vector<8x128xf32>
    %48 = tpu.matmul %46, %47, %cst_27 {dimension_numbers = #tpu.dot_dimension_numbers<[1], [0], [0], [1], [0, 0, 1, 1], [], []>} : vector<8x128xf32>, vector<128x128xf32>, vector<8x128xf32> -> vector<8x128xf32>
    %c4 = arith.constant 4 : index
    %c0_28 = arith.constant 0 : index
    %49 = vector.load %arg4[%c4, %c0_28] : memref<8x128xf32, #tpu.memory_space<vmem>>, vector<1x128xf32>
    %50 = vector.broadcast %49 : vector<1x128xf32> to vector<8x128xf32>
    %51 = arith.addf %48, %50 : vector<8x128xf32>
    %cst_29 = arith.constant 0.000000e+00 : f32
    %52 = vector.broadcast %cst_29 : f32 to vector<8x128xf32>
    %53 = arith.cmpf oge, %51, %52 : vector<8x128xf32>
    %cst_30 = arith.constant 0.00999999977 : f32
    %54 = vector.broadcast %cst_30 : f32 to vector<8x128xf32>
    %55 = arith.mulf %54, %51 : vector<8x128xf32>
    %56 = arith.select %53, %51, %55 : vector<8x128xi1>, vector<8x128xf32>
    %c512 = arith.constant 512 : index
    %c0_31 = arith.constant 0 : index
    %57 = vector.load %arg3[%c512, %c0_31] : memref<768x128xf32, #tpu.memory_space<vmem>>, vector<128x128xf32>
    %cst_32 = arith.constant dense<0.000000e+00> : vector<8x128xf32>
    %58 = tpu.matmul %56, %57, %cst_32 {dimension_numbers = #tpu.dot_dimension_numbers<[1], [0], [0], [1], [0, 0, 1, 1], [], []>} : vector<8x128xf32>, vector<128x128xf32>, vector<8x128xf32> -> vector<8x128xf32>
    %c5 = arith.constant 5 : index
    %c0_33 = arith.constant 0 : index
    %59 = vector.load %arg4[%c5, %c0_33] : memref<8x128xf32, #tpu.memory_space<vmem>>, vector<1x128xf32>
    %60 = vector.broadcast %59 : vector<1x128xf32> to vector<8x128xf32>
    %61 = arith.addf %58, %60 : vector<8x128xf32>
    %cst_34 = arith.constant 0.000000e+00 : f32
    %62 = vector.broadcast %cst_34 : f32 to vector<8x128xf32>
    %63 = arith.cmpf oge, %61, %62 : vector<8x128xf32>
    %cst_35 = arith.constant 0.00999999977 : f32
    %64 = vector.broadcast %cst_35 : f32 to vector<8x128xf32>
    %65 = arith.mulf %64, %61 : vector<8x128xf32>
    %66 = arith.select %63, %61, %65 : vector<8x128xi1>, vector<8x128xf32>
    %c640 = arith.constant 640 : index
    %c0_36 = arith.constant 0 : index
    %67 = vector.load %arg3[%c640, %c0_36] : memref<768x128xf32, #tpu.memory_space<vmem>>, vector<128x128xf32>
    %cst_37 = arith.constant dense<0.000000e+00> : vector<8x128xf32>
    %68 = tpu.matmul %66, %67, %cst_37 {dimension_numbers = #tpu.dot_dimension_numbers<[1], [0], [0], [1], [0, 0, 1, 1], [], []>} : vector<8x128xf32>, vector<128x128xf32>, vector<8x128xf32> -> vector<8x128xf32>
    %c6 = arith.constant 6 : index
    %c0_38 = arith.constant 0 : index
    %69 = vector.load %arg4[%c6, %c0_38] : memref<8x128xf32, #tpu.memory_space<vmem>>, vector<1x128xf32>
    %70 = vector.broadcast %69 : vector<1x128xf32> to vector<8x128xf32>
    %71 = arith.addf %68, %70 : vector<8x128xf32>
    %cst_39 = arith.constant 0.000000e+00 : f32
    %72 = vector.broadcast %cst_39 : f32 to vector<8x128xf32>
    %73 = arith.cmpf oge, %71, %72 : vector<8x128xf32>
    %cst_40 = arith.constant 0.00999999977 : f32
    %74 = vector.broadcast %cst_40 : f32 to vector<8x128xf32>
    %75 = arith.mulf %74, %71 : vector<8x128xf32>
    %76 = arith.select %73, %71, %75 : vector<8x128xi1>, vector<8x128xf32>
    %77 = tpu.iota {dimensions = array<i32: 1>} : vector<8x128xi32>
    %c5_i32 = arith.constant 5 : i32
    %78 = vector.broadcast %c5_i32 : i32 to vector<8x128xi32>
    %79 = arith.cmpi slt, %77, %78 : vector<8x128xi32>
    %cst_41 = arith.constant 0xFF800000 : f32
    %80 = vector.broadcast %cst_41 : f32 to vector<8x128xf32>
    %81 = arith.select %79, %76, %80 : vector<8x128xi1>, vector<8x128xf32>
    %cst_42 = arith.constant dense<0xFF800000> : vector<8xf32>
    %82 = vector.multi_reduction <maximumf>, %81, %cst_42 [1] : vector<8x128xf32> to vector<8xf32>
    %83 = vector.shape_cast %82 : vector<8xf32> to vector<8x1xf32>
    %84 = vector.broadcast %83 : vector<8x1xf32> to vector<8x128xf32>
    %85 = arith.subf %81, %84 : vector<8x128xf32>
    %86 = math.exp %85 : vector<8x128xf32>
    %cst_43 = arith.constant dense<0.000000e+00> : vector<8xf32>
    %87 = vector.multi_reduction <add>, %86, %cst_43 [1] : vector<8x128xf32> to vector<8xf32>
    %88 = vector.shape_cast %87 : vector<8xf32> to vector<8x1xf32>
    %89 = tpu.reciprocal %88 : vector<8x1xf32> -> vector<8x1xf32>
    %90 = vector.broadcast %89 : vector<8x1xf32> to vector<8x128xf32>
    %91 = arith.mulf %86, %90 : vector<8x128xf32>
    %c0_44 = arith.constant 0 : index
    %c0_45 = arith.constant 0 : index
    %92 = vector.load %arg5[%c0_44, %c0_45] : memref<8x128xf32, #tpu.memory_space<vmem>>, vector<8x128xf32>
    tpu.vector_store %arg5[%c0_44, %c0_45], %91 {strides = array<i32>} : memref<8x128xf32, #tpu.memory_space<vmem>>, vector<8x128xf32>,
    return
  }
  func.func @transform_0(%arg0: i32) -> (i32, i32) {
    %c0_i32 = arith.constant 0 : i32
    %c0_i32_0 = arith.constant 0 : i32
    return %arg0, %c0_i32 : i32, i32
  }
  func.func @transform_1(%arg0: i32) -> (i32, i32) {
    %c0_i32 = arith.constant 0 : i32
    %c0_i32_0 = arith.constant 0 : i32
    %c0_i32_1 = arith.constant 0 : i32
    return %c0_i32, %c0_i32_0 : i32, i32
  }
  func.func @transform_2(%arg0: i32) -> (i32, i32) {
    %c0_i32 = arith.constant 0 : i32
    %c0_i32_0 = arith.constant 0 : i32
    %c0_i32_1 = arith.constant 0 : i32
    return %c0_i32, %c0_i32_0 : i32, i32
  }
  func.func @transform_3(%arg0: i32) -> (i32, i32) {
    %c0_i32 = arith.constant 0 : i32
    %c0_i32_0 = arith.constant 0 : i32
    %c0_i32_1 = arith.constant 0 : i32
    return %c0_i32, %c0_i32_0 : i32, i32
  }
  func.func @transform_4(%arg0: i32) -> (i32, i32) {
    %c0_i32 = arith.constant 0 : i32
    %c0_i32_0 = arith.constant 0 : i32
    return %arg0, %c0_i32 : i32, i32
  }
}

</mosaic_0001>

<llo_original>
// kernel: tpu_custom_call.1
$region0: #{tpu_custom_call.1}
  #allocation0 [shape = 'u32[]', space=smem, size = 0x4, offset = 0x4, fixed_abs, tag = 'smem constant byte address 0x4 - core index']
  #allocation1 [shape = 'u32[72,128]{1,0:T(1,128)}', space=vmem, size = 0x9000, scoped, tag = 'internal scratch']
  %s0 = inlined_call_operand.hbm [shape: f32[2,583], index: 0, kind: input, shape index: {}]
  %s1 = inlined_call_operand.hbm [shape: f32[583,128], index: 1, kind: input, shape index: {}]
  %s2 = inlined_call_operand.hbm [shape: f32[768,128], index: 2, kind: input, shape index: {}]
  %s3 = inlined_call_operand.hbm [shape: f32[8,128], index: 3, kind: input, shape index: {}]
  %s4 = inlined_call_operand.hbm [shape: f32[2,128], index: 4, kind: output, shape index: {}]
  %s5 = sld [smem:[#allocation0]]
  $region42: #{tpu_custom_call.1} parent=0
    _
  %s7 = ssub.s32 1, %s5
  %s8 = scalar_select 0, %s7, %s5
  $region1: #{tpu_custom_call.1} parent=0
    #allocation2 [shape = 'u8[20480]{0}', space=vmem, size = 0x5000, scoped, tag = 'input window, operand 0, single buffered']
    #allocation3 [shape = 's32[1]{0}', space=sflag, size = 0x4, scoped, tag = 'scoped memory for tpu_custom_call.1']
    #allocation4 [shape = 's32[1]{0}', space=sflag, size = 0x4, scoped, tag = 'scoped memory for tpu_custom_call.1']
    #allocation5 [shape = 'u8[299008]{0}', space=vmem, size = 0x49000, scoped, tag = 'input window, operand 1, single buffered']
    #allocation6 [shape = 's32[1]{0}', space=sflag, size = 0x4, scoped, tag = 'scoped memory for tpu_custom_call.1']
    #allocation7 [shape = 'u8[393216]{0}', space=vmem, size = 0x60000, scoped, tag = 'input window, operand 2, single buffered']
    #allocation8 [shape = 'u8[4096]{0}', space=vmem, size = 0x1000, scoped, tag = 'input window, operand 3, single buffered']
    #allocation9 [shape = 's32[1]{0}', space=sflag, size = 0x4, scoped, tag = 'scoped memory for tpu_custom_call.1']
    #allocation10 [shape = 'u8[4096]{0}', space=vmem, size = 0x1000, scoped, tag = 'output window, operand 0, single buffered']
    %9 = vsyncpa [#allocation3], 0
    %10 = vsyncpa [#allocation6], 0
    %11 = vsyncpa [#allocation9], 0
    %12 = vsyncpa [#allocation4], 0
    // Predicated region
    $region2: #{tpu_custom_call.1} parent=1 // pred_check
      _
    $region3: #{tpu_custom_call.1} parent=1 // pred_check_branch
      %14 = sbr.rel (0) target = $region5
    $region4: #{tpu_custom_call.1} parent=1 // pred_region
      %16 = vsyncadd [#allocation3], 480
      %s17 = sshll.u32 %s0, 4
      %s18 = int_to_ptr.hbm [resolvable:$true] %s17
      %s19 = sshll.u32 [#allocation2], 4
      %s20 = int_to_ptr.vmem [resolvable:$true] %s19
      %25 = dma.hbm_to_vmem [thread:$0]  %s18, 160, %s20, [#allocation3], 160, 160, 10
    $region5: #{tpu_custom_call.1} parent=1 // pred_fallthru
      _
    // Predicated region
    $region6: #{tpu_custom_call.1} parent=1 // pred_check
      _
    $region7: #{tpu_custom_call.1} parent=1 // pred_check_branch
      %27 = sbr.rel (0) target = $region9
    $region8: #{tpu_custom_call.1} parent=1 // pred_region
      %29 = vsyncadd [#allocation6], 0
      %s30 = sshll.u32 %s1, 4
      %s31 = int_to_ptr.hbm [resolvable:$true] %s30
      %s32 = sshll.u32 [#allocation5], 4
      %s33 = int_to_ptr.vmem [resolvable:$true] %s32
      %38 = dma.hbm_to_vmem [thread:$0]  %s31, 9344, %s33, [#allocation6], 128, 128, 8
    $region9: #{tpu_custom_call.1} parent=1 // pred_fallthru
      _
    // Predicated region
    $region10: #{tpu_custom_call.1} parent=1 // pred_check
      _
    $region11: #{tpu_custom_call.1} parent=1 // pred_check_branch
      %40 = sbr.rel (0) target = $region13
    $region12: #{tpu_custom_call.1} parent=1 // pred_region
      %42 = vsyncadd [#allocation6], 0
      %s43 = sshll.u32 %s2, 4
      %s44 = int_to_ptr.hbm [resolvable:$true] %s43
      %s45 = sshll.u32 [#allocation7], 4
      %s46 = int_to_ptr.vmem [resolvable:$true] %s45
      %51 = dma.hbm_to_vmem [thread:$0]  %s44, 12288, %s46, [#allocation6], 128, 128, 8
    $region13: #{tpu_custom_call.1} parent=1 // pred_fallthru
      _
    // Predicated region
    $region14: #{tpu_custom_call.1} parent=1 // pred_check
      _
    $region15: #{tpu_custom_call.1} parent=1 // pred_check_branch
      %53 = sbr.rel (0) target = $region17
    $region16: #{tpu_custom_call.1} parent=1 // pred_region
      %55 = vsyncadd [#allocation9], 0
      %s57 = sshll.u32 %s3, 4
      %s58 = int_to_ptr.hbm [resolvable:$true] %s57
      %s59 = sshll.u32 [#allocation8], 4
      %s60 = int_to_ptr.vmem [resolvable:$true] %s59
      %62 = dma.hbm_to_vmem [thread:$0]  %s58, 128, %s60, [#allocation9]
    $region17: #{tpu_custom_call.1} parent=1 // pred_fallthru
      _
    // Predicated region
    $region18: #{tpu_custom_call.1} parent=1 // pred_check
      _
    $region19: #{tpu_custom_call.1} parent=1 // pred_check_branch
      %64 = sbr.rel (0) target = $region21
    $region20: #{tpu_custom_call.1} parent=1 // pred_region
      %66 = dma.done [#allocation3], 640
    $region21: #{tpu_custom_call.1} parent=1 // pred_fallthru
      _
    // Predicated region
    $region22: #{tpu_custom_call.1} parent=1 // pred_check
      _
    $region23: #{tpu_custom_call.1} parent=1 // pred_check_branch
      %68 = sbr.rel (0) target = $region25
    $region24: #{tpu_custom_call.1} parent=1 // pred_region
      %70 = dma.done [#allocation6], 9344
    $region25: #{tpu_custom_call.1} parent=1 // pred_fallthru
      _
    // Predicated region
    $region26: #{tpu_custom_call.1} parent=1 // pred_check
      _
    $region27: #{tpu_custom_call.1} parent=1 // pred_check_branch
      %72 = sbr.rel (0) target = $region29
    $region28: #{tpu_custom_call.1} parent=1 // pred_region
      %74 = dma.done [#allocation6], 12288
    $region29: #{tpu_custom_call.1} parent=1 // pred_fallthru
      _
    // Predicated region
    $region30: #{tpu_custom_call.1} parent=1 // pred_check
      _
    $region31: #{tpu_custom_call.1} parent=1 // pred_check_branch
      %76 = sbr.rel (0) target = $region33
    $region32: #{tpu_custom_call.1} parent=1 // pred_region
      %78 = dma.done [#allocation9], 128
    $region33: #{tpu_custom_call.1} parent=1 // pred_fallthru
      _
    %v79 = vld [vmem:[#allocation2] sm:$0xff]
    %v80 = vld [vmem:[#allocation2 + $0x8] sm:$0x3]
    %v81 = vld [vmem:[#allocation2 + $0xa] sm:$0xff]
    %v82 = vld [vmem:[#allocation2 + $0x12] sm:$0x3]
    %v83 = vld [vmem:[#allocation2 + $0x14] sm:$0xff]
    %v84 = vld [vmem:[#allocation2 + $0x1c] sm:$0x3]
    %v85 = vld [vmem:[#allocation2 + $0x1e] sm:$0xff]
    %v86 = vld [vmem:[#allocation2 + $0x26] sm:$0x3]
    %v87 = vld [vmem:[#allocation5] sm:$0xff]
    %v88 = vld [vmem:[#allocation5 + $0x8] sm:$0xff]
    %v89 = vld [vmem:[#allocation5 + $0x10] sm:$0xff]
    %v90 = vld [vmem:[#allocation5 + $0x18] sm:$0xff]
    %v91 = vld [vmem:[#allocation5 + $0x20] sm:$0xff]
    %v92 = vld [vmem:[#allocation5 + $0x28] sm:$0xff]
    %v93 = vld [vmem:[#allocation5 + $0x30] sm:$0xff]
    %v94 = vld [vmem:[#allocation5 + $0x38] sm:$0xff]
    %v95 = vld [vmem:[#allocation5 + $0x40] sm:$0xff]
    %v96 = vld [vmem:[#allocation5 + $0x48] sm:$0xff]
    %v97 = vld [vmem:[#allocation5 + $0x50] sm:$0xff]
    %v98 = vld [vmem:[#allocation5 + $0x58] sm:$0xff]
    %v99 = vld [vmem:[#allocation5 + $0x60] sm:$0xff]
    %v100 = vld [vmem:[#allocation5 + $0x68] sm:$0xff]
    %v101 = vld [vmem:[#allocation5 + $0x70] sm:$0xff]
    %v102 = vld [vmem:[#allocation5 + $0x78] sm:$0xff]
    %v103 = vld [vmem:[#allocation5 + $0x80] sm:$0xff]
    %v104 = vld [vmem:[#allocation5 + $0x88] sm:$0xff]
    %v105 = vld [vmem:[#allocation5 + $0x90] sm:$0xff]
    %v106 = vld [vmem:[#allocation5 + $0x98] sm:$0xff]
    %v107 = vld [vmem:[#allocation5 + $0xa0] sm:$0xff]
    %v108 = vld [vmem:[#allocation5 + $0xa8] sm:$0xff]
    %v109 = vld [vmem:[#allocation5 + $0xb0] sm:$0xff]
    %v110 = vld [vmem:[#allocation5 + $0xb8] sm:$0xff]
    %v111 = vld [vmem:[#allocation5 + $0xc0] sm:$0xff]
    %v112 = vld [vmem:[#allocation5 + $0xc8] sm:$0xff]
    %v113 = vld [vmem:[#allocation5 + $0xd0] sm:$0xff]
    %v114 = vld [vmem:[#allocation5 + $0xd8] sm:$0xff]
    %v115 = vld [vmem:[#allocation5 + $0xe0] sm:$0xff]
    %v116 = vld [vmem:[#allocation5 + $0xe8] sm:$0xff]
    %v117 = vld [vmem:[#allocation5 + $0xf0] sm:$0xff]
    %v118 = vld [vmem:[#allocation5 + $0xf8] sm:$0xff]
    %v119 = vld [vmem:[#allocation5 + $0x100] sm:$0xff]
    %v120 = vld [vmem:[#allocation5 + $0x108] sm:$0xff]
    %v121 = vld [vmem:[#allocation5 + $0x110] sm:$0xff]
    %v122 = vld [vmem:[#allocation5 + $0x118] sm:$0xff]
    %v123 = vld [vmem:[#allocation5 + $0x120] sm:$0xff]
    %v124 = vld [vmem:[#allocation5 + $0x128] sm:$0xff]
    %v125 = vld [vmem:[#allocation5 + $0x130] sm:$0xff]
    %v126 = vld [vmem:[#allocation5 + $0x138] sm:$0xff]
    %v127 = vld [vmem:[#allocation5 + $0x140] sm:$0xff]
    %v128 = vld [vmem:[#allocation5 + $0x148] sm:$0xff]
    %v129 = vld [vmem:[#allocation5 + $0x150] sm:$0xff]
    %v130 = vld [vmem:[#allocation5 + $0x158] sm:$0xff]
    %v131 = vld [vmem:[#allocation5 + $0x160] sm:$0xff]
    %v132 = vld [vmem:[#allocation5 + $0x168] sm:$0xff]
    %v133 = vld [vmem:[#allocation5 + $0x170] sm:$0xff]
    %v134 = vld [vmem:[#allocation5 + $0x178] sm:$0xff]
    %v135 = vld [vmem:[#allocation5 + $0x180] sm:$0xff]
    %v136 = vld [vmem:[#allocation5 + $0x188] sm:$0xff]
    %v137 = vld [vmem:[#allocation5 + $0x190] sm:$0xff]
    %v138 = vld [vmem:[#allocation5 + $0x198] sm:$0xff]
    %v139 = vld [vmem:[#allocation5 + $0x1a0] sm:$0xff]
    %v140 = vld [vmem:[#allocation5 + $0x1a8] sm:$0xff]
    %v141 = vld [vmem:[#allocation5 + $0x1b0] sm:$0xff]
    %v142 = vld [vmem:[#allocation5 + $0x1b8] sm:$0xff]
    %v143 = vld [vmem:[#allocation5 + $0x1c0] sm:$0xff]
    %v144 = vld [vmem:[#allocation5 + $0x1c8] sm:$0xff]
    %v145 = vld [vmem:[#allocation5 + $0x1d0] sm:$0xff]
    %v146 = vld [vmem:[#allocation5 + $0x1d8] sm:$0xff]
    %v147 = vld [vmem:[#allocation5 + $0x1e0] sm:$0xff]
    %v148 = vld [vmem:[#allocation5 + $0x1e8] sm:$0xff]
    %v149 = vld [vmem:[#allocation5 + $0x1f0] sm:$0xff]
    %v150 = vld [vmem:[#allocation5 + $0x1f8] sm:$0xff]
    %v151 = vld [vmem:[#allocation5 + $0x200] sm:$0xff]
    %v152 = vld [vmem:[#allocation5 + $0x208] sm:$0xff]
    %v153 = vld [vmem:[#allocation5 + $0x210] sm:$0xff]
    %v154 = vld [vmem:[#allocation5 + $0x218] sm:$0xff]
    %v155 = vld [vmem:[#allocation5 + $0x220] sm:$0xff]
    %v156 = vld [vmem:[#allocation5 + $0x228] sm:$0xff]
    %v157 = vld [vmem:[#allocation5 + $0x230] sm:$0xff]
    %v158 = vld [vmem:[#allocation5 + $0x238] sm:$0xff]
    %v159 = vld [vmem:[#allocation5 + $0x240] sm:$0x7f]
    %v160 = vld [vmem:[#allocation8] sm:$0x1]
    %v161 = vperm.slane %v160, 0
    %170 = vst [vmem:[#allocation1] ss:$4 sm:$0xff] %v79
    %s171 = scalar_lea.vmem [#allocation1], 1
    %172 = vst [vmem:[%s171] ss:$4 sm:$0xff] %v81
    %s173 = scalar_lea.vmem [#allocation1], 2
    %174 = vst [vmem:[%s173] ss:$4 sm:$0xff] %v83
    %s175 = scalar_lea.vmem [#allocation1], 3
    %176 = vst [vmem:[%s175] ss:$4 sm:$0xff] %v85
    %s177 = scalar_lea.vmem [#allocation1], 32
    %178 = vst [vmem:[%s177] ss:$4 sm:$0xff] %v80
    %s179 = scalar_lea.vmem [#allocation1], 33
    %180 = vst [vmem:[%s179] ss:$4 sm:$0xff] %v82
    %s181 = scalar_lea.vmem [#allocation1], 34
    %182 = vst [vmem:[%s181] ss:$4 sm:$0xff] %v84
    %s183 = scalar_lea.vmem [#allocation1], 35
    %184 = vst [vmem:[%s183] ss:$4 sm:$0xff] %v86
    %v185 = vld.sshfl [vmem:[#allocation1] sm:$0xff pattern:$0x73625140]
    %v186 = vld.sshfl [vmem:[#allocation1 + $0x8] sm:$0xff pattern:$0x73625140]
    %v187 = vld.sshfl [vmem:[#allocation1 + $0x10] sm:$0xff pattern:$0x73625140]
    %v188 = vld.sshfl [vmem:[#allocation1 + $0x18] sm:$0xff pattern:$0x73625140]
    %v189 = vld.sshfl [vmem:[#allocation1 + $0x20] sm:$0xff pattern:$0x73625140]
    %vm194 = vcmask 580608
    %v195 = vsel %vm194, %v189, 0
    %vm197 = vcmask 1046528
    %v199 = vsel %vm197, %v159, 0
    %201 = vmatpush.msra.mxu0 %v102
    %202 = vmatpush.msra.mxu0 %v101
    %203 = vmatpush.msra.mxu0 %v100
    %204 = vmatpush.msra.mxu0 %v99
    %205 = vmatpush.msra.mxu0 %v98
    %206 = vmatpush.msra.mxu0 %v97
    %207 = vmatpush.msra.mxu0 %v96
    %208 = vmatpush.msra.mxu0 %v95
    %209 = vmatpush.msra.mxu0 %v94
    %210 = vmatpush.msra.mxu0 %v93
    %211 = vmatpush.msra.mxu0 %v92
    %212 = vmatpush.msra.mxu0 %v91
    %213 = vmatpush.msra.mxu0 %v90
    %214 = vmatpush.msra.mxu0 %v89
    %215 = vmatpush.msra.mxu0 %v88
    %216 = vmatpush.msra.mxu0 %v87
    %217 = vmatmul.f32.gmra.mxu0 %v185
    %v218 = vpop.f32.mrf.mxu0
    %v219 = vadd.f32 %v161, %v218
    %220 = vdwg.mxu0
    %221 = vmatpush.msra.mxu0 %v118
    %222 = vmatpush.msra.mxu0 %v117
    %223 = vmatpush.msra.mxu0 %v116
    %224 = vmatpush.msra.mxu0 %v115
    %225 = vmatpush.msra.mxu0 %v114
    %226 = vmatpush.msra.mxu0 %v113
    %227 = vmatpush.msra.mxu0 %v112
    %228 = vmatpush.msra.mxu0 %v111
    %229 = vmatpush.msra.mxu0 %v110
    %230 = vmatpush.msra.mxu0 %v109
    %231 = vmatpush.msra.mxu0 %v108
    %232 = vmatpush.msra.mxu0 %v107
    %233 = vmatpush.msra.mxu0 %v106
    %234 = vmatpush.msra.mxu0 %v105
    %235 = vmatpush.msra.mxu0 %v104
    %236 = vmatpush.msra.mxu0 %v103
    %237 = vmatmul.f32.gmra.mxu0 %v186
    %v238 = vpop.f32.mrf.mxu0
    %v239 = vadd.f32 %v219, %v238
    %240 = vdwg.mxu0
    %241 = vmatpush.msra.mxu0 %v134
    %242 = vmatpush.msra.mxu0 %v133
    %243 = vmatpush.msra.mxu0 %v132
    %244 = vmatpush.msra.mxu0 %v131
    %245 = vmatpush.msra.mxu0 %v130
    %246 = vmatpush.msra.mxu0 %v129
    %247 = vmatpush.msra.mxu0 %v128
    %248 = vmatpush.msra.mxu0 %v127
    %249 = vmatpush.msra.mxu0 %v126
    %250 = vmatpush.msra.mxu0 %v125
    %251 = vmatpush.msra.mxu0 %v124
    %252 = vmatpush.msra.mxu0 %v123
    %253 = vmatpush.msra.mxu0 %v122
    %254 = vmatpush.msra.mxu0 %v121
    %255 = vmatpush.msra.mxu0 %v120
    %256 = vmatpush.msra.mxu0 %v119
    %257 = vmatmul.f32.gmra.mxu0 %v187
    %v258 = vpop.f32.mrf.mxu0
    %v259 = vadd.f32 %v239, %v258
    %260 = vdwg.mxu0
    %261 = vmatpush.msra.mxu0 %v150
    %262 = vmatpush.msra.mxu0 %v149
    %263 = vmatpush.msra.mxu0 %v148
    %264 = vmatpush.msra.mxu0 %v147
    %265 = vmatpush.msra.mxu0 %v146
    %266 = vmatpush.msra.mxu0 %v145
    %267 = vmatpush.msra.mxu0 %v144
    %268 = vmatpush.msra.mxu0 %v143
    %269 = vmatpush.msra.mxu0 %v142
    %270 = vmatpush.msra.mxu0 %v141
    %271 = vmatpush.msra.mxu0 %v140
    %272 = vmatpush.msra.mxu0 %v139
    %273 = vmatpush.msra.mxu0 %v138
    %274 = vmatpush.msra.mxu0 %v137
    %275 = vmatpush.msra.mxu0 %v136
    %276 = vmatpush.msra.mxu0 %v135
    %277 = vmatmul.f32.gmra.mxu0 %v188
    %v278 = vpop.f32.mrf.mxu0
    %v279 = vadd.f32 %v259, %v278
    %280 = vdwg.mxu0
    %281 = vmatpush.msra.mxu0 0.0
    %282 = vmatpush.msra.mxu0 0.0
    %283 = vmatpush.msra.mxu0 0.0
    %284 = vmatpush.msra.mxu0 0.0
    %285 = vmatpush.msra.mxu0 0.0
    %286 = vmatpush.msra.mxu0 0.0
    %287 = vmatpush.msra.mxu0 0.0
    %288 = vmatpush.msra.mxu0 %v199
    %289 = vmatpush.msra.mxu0 %v158
    %290 = vmatpush.msra.mxu0 %v157
    %291 = vmatpush.msra.mxu0 %v156
    %292 = vmatpush.msra.mxu0 %v155
    %293 = vmatpush.msra.mxu0 %v154
    %294 = vmatpush.msra.mxu0 %v153
    %295 = vmatpush.msra.mxu0 %v152
    %296 = vmatpush.msra.mxu0 %v151
    %297 = vmatmul.f32.gmra.mxu0 %v195
    %v298 = vpop.f32.mrf.mxu0
    %v299 = vadd.f32 %v279, %v298
    %300 = vdwg.mxu0
    %vm301 = vcmp.ge.f32.partialorder %v299, 0.0
    %v302 = vmul.f32 %v299, 0.01
    %v303 = vsel %vm301, %v299, %v302
    %v304 = vld [vmem:[#allocation7] sm:$0xff]
    %v305 = vld [vmem:[#allocation7 + $0x8] sm:$0xff]
    %v306 = vld [vmem:[#allocation7 + $0x10] sm:$0xff]
    %v307 = vld [vmem:[#allocation7 + $0x18] sm:$0xff]
    %v308 = vld [vmem:[#allocation7 + $0x20] sm:$0xff]
    %v309 = vld [vmem:[#allocation7 + $0x28] sm:$0xff]
    %v310 = vld [vmem:[#allocation7 + $0x30] sm:$0xff]
    %v311 = vld [vmem:[#allocation7 + $0x38] sm:$0xff]
    %v312 = vld [vmem:[#allocation7 + $0x40] sm:$0xff]
    %v313 = vld [vmem:[#allocation7 + $0x48] sm:$0xff]
    %v314 = vld [vmem:[#allocation7 + $0x50] sm:$0xff]
    %v315 = vld [vmem:[#allocation7 + $0x58] sm:$0xff]
    %v316 = vld [vmem:[#allocation7 + $0x60] sm:$0xff]
    %v317 = vld [vmem:[#allocation7 + $0x68] sm:$0xff]
    %v318 = vld [vmem:[#allocation7 + $0x70] sm:$0xff]
    %v319 = vld [vmem:[#allocation7 + $0x78] sm:$0xff]
    %v320 = vld [vmem:[#allocation8 + $0x1] sm:$0x1]
    %v321 = vperm.slane %v320, 0
    %322 = vmatpush.msra.mxu0 %v319
    %323 = vmatpush.msra.mxu0 %v318
    %324 = vmatpush.msra.mxu0 %v317
    %325 = vmatpush.msra.mxu0 %v316
    %326 = vmatpush.msra.mxu0 %v315
    %327 = vmatpush.msra.mxu0 %v314
    %328 = vmatpush.msra.mxu0 %v313
    %329 = vmatpush.msra.mxu0 %v312
    %330 = vmatpush.msra.mxu0 %v311
    %331 = vmatpush.msra.mxu0 %v310
    %332 = vmatpush.msra.mxu0 %v309
    %333 = vmatpush.msra.mxu0 %v308
    %334 = vmatpush.msra.mxu0 %v307
    %335 = vmatpush.msra.mxu0 %v306
    %336 = vmatpush.msra.mxu0 %v305
    %337 = vmatpush.msra.mxu0 %v304
    %338 = vmatmul.f32.gmra.mxu0 %v303
    %v339 = vpop.f32.mrf.mxu0
    %v340 = vadd.f32 %v321, %v339
    %341 = vdwg.mxu0
    %v342 = vmul.f32 %v340, 0.5
    %v343 = vtanh.pop %v342
    %v344 = vmul.f32 %v343, 0.5
    %v345 = vadd.f32 %v344, 0.5
    %v346 = vld [vmem:[#allocation7 + $0x80] sm:$0xff]
    %v347 = vld [vmem:[#allocation7 + $0x88] sm:$0xff]
    %v348 = vld [vmem:[#allocation7 + $0x90] sm:$0xff]
    %v349 = vld [vmem:[#allocation7 + $0x98] sm:$0xff]
    %v350 = vld [vmem:[#allocation7 + $0xa0] sm:$0xff]
    %v351 = vld [vmem:[#allocation7 + $0xa8] sm:$0xff]
    %v352 = vld [vmem:[#allocation7 + $0xb0] sm:$0xff]
    %v353 = vld [vmem:[#allocation7 + $0xb8] sm:$0xff]
    %v354 = vld [vmem:[#allocation7 + $0xc0] sm:$0xff]
    %v355 = vld [vmem:[#allocation7 + $0xc8] sm:$0xff]
    %v356 = vld [vmem:[#allocation7 + $0xd0] sm:$0xff]
    %v357 = vld [vmem:[#allocation7 + $0xd8] sm:$0xff]
    %v358 = vld [vmem:[#allocation7 + $0xe0] sm:$0xff]
    %v359 = vld [vmem:[#allocation7 + $0xe8] sm:$0xff]
    %v360 = vld [vmem:[#allocation7 + $0xf0] sm:$0xff]
    %v361 = vld [vmem:[#allocation7 + $0xf8] sm:$0xff]
    %v362 = vld [vmem:[#allocation8 + $0x2] sm:$0x1]
    %v363 = vperm.slane %v362, 0
    %364 = vmatpush.msra.mxu0 %v361
    %365 = vmatpush.msra.mxu0 %v360
    %366 = vmatpush.msra.mxu0 %v359
    %367 = vmatpush.msra.mxu0 %v358
    %368 = vmatpush.msra.mxu0 %v357
    %369 = vmatpush.msra.mxu0 %v356
    %370 = vmatpush.msra.mxu0 %v355
    %371 = vmatpush.msra.mxu0 %v354
    %372 = vmatpush.msra.mxu0 %v353
    %373 = vmatpush.msra.mxu0 %v352
    %374 = vmatpush.msra.mxu0 %v351
    %375 = vmatpush.msra.mxu0 %v350
    %376 = vmatpush.msra.mxu0 %v349
    %377 = vmatpush.msra.mxu0 %v348
    %378 = vmatpush.msra.mxu0 %v347
    %379 = vmatpush.msra.mxu0 %v346
    %380 = vmatmul.f32.gmra.mxu0 %v345
    %v381 = vpop.f32.mrf.mxu0
    %v382 = vadd.f32 %v363, %v381
    %383 = vdwg.mxu0
    %v384 = vmul.f32 %v382, 0.5
    %v385 = vtanh.pop %v384
    %v386 = vmul.f32 %v385, 0.5
    %v387 = vadd.f32 %v386, 0.5
    %v388 = vld [vmem:[#allocation7 + $0x100] sm:$0xff]
    %v389 = vld [vmem:[#allocation7 + $0x108] sm:$0xff]
    %v390 = vld [vmem:[#allocation7 + $0x110] sm:$0xff]
    %v391 = vld [vmem:[#allocation7 + $0x118] sm:$0xff]
    %v392 = vld [vmem:[#allocation7 + $0x120] sm:$0xff]
    %v393 = vld [vmem:[#allocation7 + $0x128] sm:$0xff]
    %v394 = vld [vmem:[#allocation7 + $0x130] sm:$0xff]
    %v395 = vld [vmem:[#allocation7 + $0x138] sm:$0xff]
    %v396 = vld [vmem:[#allocation7 + $0x140] sm:$0xff]
    %v397 = vld [vmem:[#allocation7 + $0x148] sm:$0xff]
    %v398 = vld [vmem:[#allocation7 + $0x150] sm:$0xff]
    %v399 = vld [vmem:[#allocation7 + $0x158] sm:$0xff]
    %v400 = vld [vmem:[#allocation7 + $0x160] sm:$0xff]
    %v401 = vld [vmem:[#allocation7 + $0x168] sm:$0xff]
    %v402 = vld [vmem:[#allocation7 + $0x170] sm:$0xff]
    %v403 = vld [vmem:[#allocation7 + $0x178] sm:$0xff]
    %v404 = vld [vmem:[#allocation8 + $0x3] sm:$0x1]
    %v405 = vperm.slane %v404, 0
    %406 = vmatpush.msra.mxu0 %v403
    %407 = vmatpush.msra.mxu0 %v402
    %408 = vmatpush.msra.mxu0 %v401
    %409 = vmatpush.msra.mxu0 %v400
    %410 = vmatpush.msra.mxu0 %v399
    %411 = vmatpush.msra.mxu0 %v398
    %412 = vmatpush.msra.mxu0 %v397
    %413 = vmatpush.msra.mxu0 %v396
    %414 = vmatpush.msra.mxu0 %v395
    %415 = vmatpush.msra.mxu0 %v394
    %416 = vmatpush.msra.mxu0 %v393
    %417 = vmatpush.msra.mxu0 %v392
    %418 = vmatpush.msra.mxu0 %v391
    %419 = vmatpush.msra.mxu0 %v390
    %420 = vmatpush.msra.mxu0 %v389
    %421 = vmatpush.msra.mxu0 %v388
    %422 = vmatmul.f32.gmra.mxu0 %v387
    %v423 = vpop.f32.mrf.mxu0
    %v424 = vadd.f32 %v405, %v423
    %425 = vdwg.mxu0
    %v426 = vmul.f32 %v424, 0.5
    %v427 = vtanh.pop %v426
    %v428 = vmul.f32 %v427, 0.5
    %v429 = vadd.f32 %v428, 0.5
    %v430 = vld [vmem:[#allocation7 + $0x180] sm:$0xff]
    %v431 = vld [vmem:[#allocation7 + $0x188] sm:$0xff]
    %v432 = vld [vmem:[#allocation7 + $0x190] sm:$0xff]
    %v433 = vld [vmem:[#allocation7 + $0x198] sm:$0xff]
    %v434 = vld [vmem:[#allocation7 + $0x1a0] sm:$0xff]
    %v435 = vld [vmem:[#allocation7 + $0x1a8] sm:$0xff]
    %v436 = vld [vmem:[#allocation7 + $0x1b0] sm:$0xff]
    %v437 = vld [vmem:[#allocation7 + $0x1b8] sm:$0xff]
    %v438 = vld [vmem:[#allocation7 + $0x1c0] sm:$0xff]
    %v439 = vld [vmem:[#allocation7 + $0x1c8] sm:$0xff]
    %v440 = vld [vmem:[#allocation7 + $0x1d0] sm:$0xff]
    %v441 = vld [vmem:[#allocation7 + $0x1d8] sm:$0xff]
    %v442 = vld [vmem:[#allocation7 + $0x1e0] sm:$0xff]
    %v443 = vld [vmem:[#allocation7 + $0x1e8] sm:$0xff]
    %v444 = vld [vmem:[#allocation7 + $0x1f0] sm:$0xff]
    %v445 = vld [vmem:[#allocation7 + $0x1f8] sm:$0xff]
    %v446 = vld [vmem:[#allocation8 + $0x4] sm:$0x1]
    %v447 = vperm.slane %v446, 0
    %448 = vmatpush.msra.mxu0 %v445
    %449 = vmatpush.msra.mxu0 %v444
    %450 = vmatpush.msra.mxu0 %v443
    %451 = vmatpush.msra.mxu0 %v442
    %452 = vmatpush.msra.mxu0 %v441
    %453 = vmatpush.msra.mxu0 %v440
    %454 = vmatpush.msra.mxu0 %v439
    %455 = vmatpush.msra.mxu0 %v438
    %456 = vmatpush.msra.mxu0 %v437
    %457 = vmatpush.msra.mxu0 %v436
    %458 = vmatpush.msra.mxu0 %v435
    %459 = vmatpush.msra.mxu0 %v434
    %460 = vmatpush.msra.mxu0 %v433
    %461 = vmatpush.msra.mxu0 %v432
    %462 = vmatpush.msra.mxu0 %v431
    %463 = vmatpush.msra.mxu0 %v430
    %464 = vmatmul.f32.gmra.mxu0 %v429
    %v465 = vpop.f32.mrf.mxu0
    %v466 = vadd.f32 %v447, %v465
    %467 = vdwg.mxu0
    %vm468 = vcmp.ge.f32.partialorder %v466, 0.0
    %v469 = vmul.f32 %v466, 0.01
    %v470 = vsel %vm468, %v466, %v469
    %v471 = vld [vmem:[#allocation7 + $0x200] sm:$0xff]
    %v472 = vld [vmem:[#allocation7 + $0x208] sm:$0xff]
    %v473 = vld [vmem:[#allocation7 + $0x210] sm:$0xff]
    %v474 = vld [vmem:[#allocation7 + $0x218] sm:$0xff]
    %v475 = vld [vmem:[#allocation7 + $0x220] sm:$0xff]
    %v476 = vld [vmem:[#allocation7 + $0x228] sm:$0xff]
    %v477 = vld [vmem:[#allocation7 + $0x230] sm:$0xff]
    %v478 = vld [vmem:[#allocation7 + $0x238] sm:$0xff]
    %v479 = vld [vmem:[#allocation7 + $0x240] sm:$0xff]
    %v480 = vld [vmem:[#allocation7 + $0x248] sm:$0xff]
    %v481 = vld [vmem:[#allocation7 + $0x250] sm:$0xff]
    %v482 = vld [vmem:[#allocation7 + $0x258] sm:$0xff]
    %v483 = vld [vmem:[#allocation7 + $0x260] sm:$0xff]
    %v484 = vld [vmem:[#allocation7 + $0x268] sm:$0xff]
    %v485 = vld [vmem:[#allocation7 + $0x270] sm:$0xff]
    %v486 = vld [vmem:[#allocation7 + $0x278] sm:$0xff]
    %v487 = vld [vmem:[#allocation8 + $0x5] sm:$0x1]
    %v488 = vperm.slane %v487, 0
    %489 = vmatpush.msra.mxu0 %v486
    %490 = vmatpush.msra.mxu0 %v485
    %491 = vmatpush.msra.mxu0 %v484
    %492 = vmatpush.msra.mxu0 %v483
    %493 = vmatpush.msra.mxu0 %v482
    %494 = vmatpush.msra.mxu0 %v481
    %495 = vmatpush.msra.mxu0 %v480
    %496 = vmatpush.msra.mxu0 %v479
    %497 = vmatpush.msra.mxu0 %v478
    %498 = vmatpush.msra.mxu0 %v477
    %499 = vmatpush.msra.mxu0 %v476
    %500 = vmatpush.msra.mxu0 %v475
    %501 = vmatpush.msra.mxu0 %v474
    %502 = vmatpush.msra.mxu0 %v473
    %503 = vmatpush.msra.mxu0 %v472
    %504 = vmatpush.msra.mxu0 %v471
    %505 = vmatmul.f32.gmra.mxu0 %v470
    %v506 = vpop.f32.mrf.mxu0
    %v507 = vadd.f32 %v488, %v506
    %508 = vdwg.mxu0
    %vm509 = vcmp.ge.f32.partialorder %v507, 0.0
    %v510 = vmul.f32 %v507, 0.01
    %v511 = vsel %vm509, %v507, %v510
    %v512 = vld [vmem:[#allocation7 + $0x280] sm:$0xff]
    %v513 = vld [vmem:[#allocation7 + $0x288] sm:$0xff]
    %v514 = vld [vmem:[#allocation7 + $0x290] sm:$0xff]
    %v515 = vld [vmem:[#allocation7 + $0x298] sm:$0xff]
    %v516 = vld [vmem:[#allocation7 + $0x2a0] sm:$0xff]
    %v517 = vld [vmem:[#allocation7 + $0x2a8] sm:$0xff]
    %v518 = vld [vmem:[#allocation7 + $0x2b0] sm:$0xff]
    %v519 = vld [vmem:[#allocation7 + $0x2b8] sm:$0xff]
    %v520 = vld [vmem:[#allocation7 + $0x2c0] sm:$0xff]
    %v521 = vld [vmem:[#allocation7 + $0x2c8] sm:$0xff]
    %v522 = vld [vmem:[#allocation7 + $0x2d0] sm:$0xff]
    %v523 = vld [vmem:[#allocation7 + $0x2d8] sm:$0xff]
    %v524 = vld [vmem:[#allocation7 + $0x2e0] sm:$0xff]
    %v525 = vld [vmem:[#allocation7 + $0x2e8] sm:$0xff]
    %v526 = vld [vmem:[#allocation7 + $0x2f0] sm:$0xff]
    %v527 = vld [vmem:[#allocation7 + $0x2f8] sm:$0xff]
    %v528 = vld [vmem:[#allocation8 + $0x6] sm:$0x1]
    %v529 = vperm.slane %v528, 0
    %530 = vmatpush.msra.mxu0 %v527
    %531 = vmatpush.msra.mxu0 %v526
    %532 = vmatpush.msra.mxu0 %v525
    %533 = vmatpush.msra.mxu0 %v524
    %534 = vmatpush.msra.mxu0 %v523
    %535 = vmatpush.msra.mxu0 %v522
    %536 = vmatpush.msra.mxu0 %v521
    %537 = vmatpush.msra.mxu0 %v520
    %538 = vmatpush.msra.mxu0 %v519
    %539 = vmatpush.msra.mxu0 %v518
    %540 = vmatpush.msra.mxu0 %v517
    %541 = vmatpush.msra.mxu0 %v516
    %542 = vmatpush.msra.mxu0 %v515
    %543 = vmatpush.msra.mxu0 %v514
    %544 = vmatpush.msra.mxu0 %v513
    %545 = vmatpush.msra.mxu0 %v512
    %546 = vmatmul.f32.gmra.mxu0 %v511
    %v547 = vpop.f32.mrf.mxu0
    %v548 = vadd.f32 %v529, %v547
    %549 = vdwg.mxu0
    %vm550 = vcmp.ge.f32.partialorder %v548, 0.0
    %v551 = vmul.f32 %v548, 0.01
    %v552 = vsel %vm550, %v548, %v551
    %v553 = vlaneseq
    %v554 = vand.u32 %v553, 127
    %vm555 = vcmp.lt.s32.totalorder %v554, 5
    %v556 = vsel %vm555, %v552, -inf
    %557 = vmax.xlane.f32.xlu0 %v556
    %v558 = vpop.xlane.xlu0 %557
    %v559 = vsub.f32 %v556, %v558
    %v560 = vmul.f32 %v559, 1.442695
    %v561 = vpow.pop %v560
    %562 = vadd.xlane.f32.xlu0 %v561
    %v563 = vpop.xlane.xlu0 %562
    %v564 = vrcp.pop %v563
    %v565 = vmul.f32 %v563, %v564
    %v566 = vsub.f32 1.0, %v565
    %v567 = vmul.f32 %v564, %v566
    %v568 = vadd.f32 %v564, %v567
    %vm569 = vweird.f32 %v563
    %vm570 = vweird.f32 %v564
    %vm571 = vmor %vm569, %vm570
    %v572 = vsel %vm571, %v564, %v568
    %v573 = vand.u32 2147483647, %v563
    %vm574 = vcmp.eq.f32.partialorder %v573, 8.507059e+37
    %v575 = vand.u32 %v563, 2147483648
    %v576 = vor.u32 1.1754944e-38, %v575
    %v577 = vsel %vm574, %v576, %v572
    %v578 = vmul.f32 %v561, %v577
    %579 = vst [vmem:[#allocation10] sm:$0xff] %v578
    // Predicated region
    $region34: #{tpu_custom_call.1} parent=1 // pred_check
      _
    $region35: #{tpu_custom_call.1} parent=1 // pred_check_branch
      %581 = sbr.rel (0) target = $region37
    $region36: #{tpu_custom_call.1} parent=1 // pred_region
      %583 = vsyncadd [#allocation4], 96
      %s584 = sshll.u32 [#allocation10], 4
      %s585 = int_to_ptr.vmem [resolvable:$true] %s584
      %s586 = sshll.u32 %s4, 4
      %s587 = int_to_ptr.hbm [resolvable:$true] %s586
      %592 = dma.vmem_to_hbm [thread:$0]  %s585, 32, %s587, [#allocation4], 32, 32, 2
    $region37: #{tpu_custom_call.1} parent=1 // pred_fallthru
      _
    // Predicated region
    $region38: #{tpu_custom_call.1} parent=1 // pred_check
      _
    $region39: #{tpu_custom_call.1} parent=1 // pred_check_branch
      %594 = sbr.rel (0) target = $region41
    $region40: #{tpu_custom_call.1} parent=1 // pred_region
      %596 = dma.done [#allocation4], 128
    $region41: #{tpu_custom_call.1} parent=1 // pred_fallthru
      _
    %597 = vsyncpa [#allocation3], 1
    %598 = vsyncpa [#allocation6], 1
    %599 = vsyncpa [#allocation9], 1
    %600 = vsyncpa [#allocation4], 1

</llo_original>
